<compile_context>
chip_gen: v5e
topology: v5e:2x2
jax: 0.10.0
libtpu: 0.0.40
codegen_flags: <defaults>
</compile_context>

<pallas_src>
import functools

import jax
import jax.numpy as jnp
from jax.experimental import pallas as pl
from jax.experimental.pallas import tpu as pltpu


# ---------------------------------------------------------------------------
# helpers
# ---------------------------------------------------------------------------
def _pick_tile(n, candidates):
    for t in candidates:
        if n % t == 0:
            return t
    return n  # small / odd dims: single full-extent block (always legal)


def _vmem_limit_bytes():
    # size the scoped VMEM limit per generation (128 MiB parts vs v7x's 64 MiB)
    try:
        cap = int(pltpu.get_tpu_info().vmem_capacity_bytes)
    except Exception:
        cap = 64 * 1024 * 1024
    return int(min(cap * 3 // 4, 100 * 1024 * 1024))


def _compiler_params(dim_semantics):
    return pltpu.CompilerParams(
        dimension_semantics=dim_semantics,
        vmem_limit_bytes=_vmem_limit_bytes())


# ---------------------------------------------------------------------------
# Kernel 1: backbone hidden layer  h = relu(x @ W0 + b0)
#   grid = (row tiles [parallel], K tiles [arbitrary])
#   Used for both the loss path (2B stacked rows, bf16 out) and the embedding
#   path (B rows, f32 out).
# ---------------------------------------------------------------------------
def encoder_kernel(x_ref, w0_ref, b0_ref, h_ref, acc_ref):
    k = pl.program_id(1)

    @pl.when(k == 0)
    def _():
        acc_ref[...] = jnp.zeros_like(acc_ref)

    # bf16 operands, f32 accumulation on the MXU
    acc_ref[...] += jnp.dot(x_ref[...], w0_ref[...],
                            preferred_element_type=jnp.float32)

    @pl.when(k == pl.num_programs(1) - 1)
    def _():
        h_ref[...] = jnp.maximum(acc_ref[...] + b0_ref[...],
                                 0.0).astype(h_ref.dtype)


def encode(x_flat, params, out_dtype):
    R, in_dim = x_flat.shape
    feat = params["w0"].shape[1]
    tm = _pick_tile(R, (256, 128))
    tk = _pick_tile(in_dim, (1024, 512, 256, 128))
    grid = (R // tm, in_dim // tk)

    return pl.pallas_call(
        encoder_kernel,
        out_shape=jax.ShapeDtypeStruct((R, feat), out_dtype),
        grid_spec=pltpu.PrefetchScalarGridSpec(
            num_scalar_prefetch=0,
            grid=grid,
            in_specs=[
                pl.BlockSpec((tm, tk), lambda i, k: (i, k)),      # x tile (bf16)
                pl.BlockSpec((tk, feat), lambda i, k: (k, 0)),    # w0 tile (bf16)
                pl.BlockSpec((1, feat), lambda i, k: (0, 0)),     # b0 (resident)
            ],
            out_specs=pl.BlockSpec((tm, feat), lambda i, k: (i, 0)),
            scratch_shapes=[pltpu.VMEM((tm, feat), jnp.float32)],
        ),
        compiler_params=_compiler_params(("parallel", "arbitrary")),
    )(x_flat, params["w0"], params["b0"])


# ---------------------------------------------------------------------------
# Kernel 2 (loss path only): projector MLP, one grid step per view (parallel).
#   Linear -> BatchNorm1d (train mode, exact per-view batch stats) -> ReLU -> Linear
# ---------------------------------------------------------------------------
def projector_kernel(h_ref, w1_ref, b1_ref, gamma_ref, beta_ref,
                     w2_ref, b2_ref, proj_ref):
    # h_ref: (B, feat) bf16 — all rows of ONE augmented view
    z = jnp.dot(h_ref[...], w1_ref[...],
                preferred_element_type=jnp.float32) + b1_ref[...]     # (B, Hd) f32

    mu = jnp.mean(z, axis=0, keepdims=True)
    d = z - mu
    var = jnp.mean(d * d, axis=0, keepdims=True)                      # biased var (train mode)
    zn = d * jax.lax.rsqrt(var + 1e-5) * gamma_ref[...] + beta_ref[...]
    a = jnp.maximum(zn, 0.0).astype(jnp.bfloat16)

    proj_ref[...] = (jnp.dot(a, w2_ref[...],
                             preferred_element_type=jnp.float32)
                     + b2_ref[...]).astype(proj_ref.dtype)


def project(h_views, params):
    V, B, feat = h_views.shape                      # V == 2
    proj_size = params["w2"].shape[1]

    full = lambda arr: pl.BlockSpec(arr.shape, lambda v: (0,) * arr.ndim)

    return pl.pallas_call(
        projector_kernel,
        out_shape=jax.ShapeDtypeStruct((V, B, proj_size), jnp.bfloat16),
        grid_spec=pltpu.PrefetchScalarGridSpec(
            num_scalar_prefetch=0,
            grid=(V,),
            in_specs=[
                pl.BlockSpec((None, B, feat), lambda v: (v, 0, 0)),   # this view's hidden
                full(params["w1"]), full(params["b1"]),
                full(params["gamma"]), full(params["beta"]),
                full(params["w2"]), full(params["b2"]),
            ],
            out_specs=pl.BlockSpec((None, B, proj_size), lambda v: (v, 0, 0)),
        ),
        compiler_params=_compiler_params(("parallel",)),
    )(h_views, params["w1"], params["b1"], params["gamma"],
      params["beta"], params["w2"], params["b2"])


# ---------------------------------------------------------------------------
# Kernel 3: NT-Xent loss, grid = (view, row-tile) — both axes parallel.
#   Per-row terms  logsumexp_{j != i}(sim_ij / T) - sim_{i, partner(i)} / T  are
#   written per block; the mean over 2B rows is taken in JAX (identical math to
#   mean(-log(pos / denom)) of the PyTorch module, but max-subtracted / stable).
#   The positive similarity is extracted from the similarity block itself (the
#   partner column of the other view), so no second projection stream is needed.
# ---------------------------------------------------------------------------
def ntxent_kernel(rows_ref, cols_ref, loss_ref, *, inv_temperature):
    v = pl.program_id(0)
    j = pl.program_id(1)

    rows = rows_ref[...]                            # (tb, P) bf16 query rows of view v
    tb = rows.shape[0]
    B = cols_ref.shape[1]

    dims = (((1,), (1,)), ((), ()))                 # contract on P
    s0 = jax.lax.dot_general(rows, cols_ref[0], dims,
                             preferred_element_type=jnp.float32) * inv_temperature
    s1 = jax.lax.dot_general(rows, cols_ref[1], dims,
                             preferred_element_type=jnp.float32) * inv_temperature

    local = jax.lax.broadcasted_iota(jnp.int32, (tb, B), 0)
    col = jax.lax.broadcasted_iota(jnp.int32, (tb, B), 1)
    part_col = j * tb + local                       # within-view column of self / partner
    grow = v * B + part_col                         # global row index in [0, 2B)
    neg = jnp.float32(-1e30)
    s0 = jnp.where(col == grow, neg, s0)            # masks the self term only when v == 0
    s1 = jnp.where(col + B == grow, neg, s1)        # masks the self term only when v == 1

    # Positive pair: at column part_col one half holds the (-1e30)-masked self term and
    # the other holds <out_i, out_partner(i)>/T, so max() selects the positive.
    pos = jnp.sum(jnp.where(col == part_col, jnp.maximum(s0, s1), 0.0),
                  axis=-1, keepdims=True)           # (tb, 1)

    m = jnp.maximum(jnp.max(s0, axis=-1, keepdims=True),
                    jnp.max(s1, axis=-1, keepdims=True))
    denom = (jnp.sum(jnp.exp(s0 - m), axis=-1, keepdims=True)
             + jnp.sum(jnp.exp(s1 - m), axis=-1, keepdims=True))
    loss_ref[...] = m + jnp.log(denom) - pos        # per-row loss terms


def ntxent_loss(proj_views, temperature):
    V, B, P = proj_views.shape                      # V == 2
    tb = _pick_tile(B, (256, 128))
    nj = B // tb

    partials = pl.pallas_call(
        functools.partial(ntxent_kernel, inv_temperature=1.0 / temperature),
        out_shape=jax.ShapeDtypeStruct((V, nj, tb, 1), jnp.float32),
        grid_spec=pltpu.PrefetchScalarGridSpec(
            num_scalar_prefetch=0,
            grid=(V, nj),
            in_specs=[
                pl.BlockSpec((None, tb, P), lambda v, j: (v, j, 0)),  # query row tile
                pl.BlockSpec((V, B, P), lambda v, j: (0, 0, 0)),      # all columns (resident)
            ],
            out_specs=pl.BlockSpec((None, None, tb, 1),
                                   lambda v, j: (v, j, 0, 0)),
        ),
        compiler_params=_compiler_params(("parallel", "parallel")),
    )(proj_views, proj_views)
    return jnp.mean(partials)                       # mean over all 2B rows


# ---------------------------------------------------------------------------
# Parameter construction (deterministic synthetic backbone + projector;
# weights stored bf16 for the MXU, biases / BN affine in f32)
# ---------------------------------------------------------------------------
def init_params(key, in_dim, feat_dim, proj_hidden, proj_size):
    k0, k1, k2 = jax.random.split(key, 3)
    s = lambda fan_in: 1.0 / jnp.sqrt(jnp.float32(fan_in))
    return {
        # backbone Linear (the hook sits after its ReLU)
        "w0": (jax.random.normal(k0, (in_dim, feat_dim), jnp.float32)
               * s(in_dim)).astype(jnp.bfloat16),
        "b0": jnp.zeros((1, feat_dim), jnp.float32),
        # projector MLP
        "w1": (jax.random.normal(k1, (feat_dim, proj_hidden), jnp.float32)
               * s(feat_dim)).astype(jnp.bfloat16),
        "b1": jnp.zeros((1, proj_hidden), jnp.float32),
        "gamma": jnp.ones((1, proj_hidden), jnp.float32),
        "beta": jnp.zeros((1, proj_hidden), jnp.float32),
        "w2": (jax.random.normal(k2, (proj_hidden, proj_size), jnp.float32)
               * s(proj_hidden)).astype(jnp.bfloat16),
        "b2": jnp.zeros((1, proj_size), jnp.float32),
    }


# ---------------------------------------------------------------------------
# Median.forward equivalent
# ---------------------------------------------------------------------------
def median_forward(x, params, *, temperature=0.1, return_embedding=False):
    B = x.shape[0]

    if return_embedding:
        return encode(x.reshape(B, -1).astype(jnp.bfloat16), params,
                      out_dtype=jnp.float32)

    # TODO(synk): stochastic torchvision augmentation pipeline not translated;
    # deterministic stand-ins (identity / horizontal flip) used instead.
    image_one = x
    image_two = jnp.flip(x, axis=-1)

    # stack both views so the backbone runs ONCE over 2B rows (bf16 stream)
    x2 = jnp.concatenate([image_one.reshape(B, -1),
                          image_two.reshape(B, -1)], axis=0).astype(jnp.bfloat16)
    h = encode(x2, params, out_dtype=jnp.bfloat16)          # (2B, feat) bf16
    proj = project(h.reshape(2, B, -1), params)             # (2, B, P)  bf16
    return ntxent_loss(proj, temperature)


if __name__ == "__main__":
    key = jax.random.PRNGKey(0)
    kx, kp = jax.random.split(key)

    # small synthetic shapes
    B, C, H, W = 2, 4, 16, 16
    feat_dim, proj_hidden, proj_size = 256, 256, 128

    x = jax.random.normal(kx, (B, C, H, W), jnp.float32)
    params = init_params(kp, C * H * W, feat_dim, proj_hidden, proj_size)

    loss = median_forward(x, params, temperature=0.1)
    jax.block_until_ready(loss)

    rep = median_forward(x, params, return_embedding=True)
    jax.block_until_ready(rep)

    assert loss.shape == ()
    assert rep.shape == (B, feat_dim)
    assert bool(jnp.isfinite(loss))
    print("KERNEL_OK")
</pallas_src>

<mosaic_0001>
module attributes {stable_mosaic.version = 11 : i64} {
  func.func @encoder_kernel(%arg0: i32, %arg1: i32, %arg2: memref<4x1024xbf16, #tpu.memory_space<vmem>>, %arg3: memref<1024x256xbf16, #tpu.memory_space<vmem>>, %arg4: memref<1x256xf32, #tpu.memory_space<vmem>>, %arg5: memref<4x256xbf16, #tpu.memory_space<vmem>>, %arg6: memref<4x256xf32, #tpu.memory_space<vmem>>) attributes {dimension_semantics = [#tpu.dimension_semantics<parallel>, #tpu.dimension_semantics<arbitrary>], iteration_bounds = array<i64: 1, 1>, scalar_prefetch = 0 : i64, scratch_operands = 1 : i64, tpu.core_type = #tpu.core_type<tc>, window_params = [{transform_indices = @transform_0, window_bounds = array<i64: 4, 1024>}, {transform_indices = @transform_1, window_bounds = array<i64: 1024, 256>}, {pipeline_mode = #tpu.pipeline_mode<synchronous>, transform_indices = @transform_2, window_bounds = array<i64: 1, 256>}, {transform_indices = @transform_3, window_bounds = array<i64: 4, 256>}]} {
    %c0_i32 = arith.constant 0 : i32
    %0 = arith.cmpi eq, %arg1, %c0_i32 : i32
    %1 = arith.extui %0 : i1 to i32
    %c0_i32_0 = arith.constant 0 : i32
    %2 = arith.cmpi ne, %1, %c0_i32_0 : i32
    scf.if %2 {
      %cst_10 = arith.constant 0.000000e+00 : f32
      %12 = vector.broadcast %cst_10 : f32 to vector<4x256xf32>
      %c0_11 = arith.constant 0 : index
      %c0_12 = arith.constant 0 : index
      %13 = vector.load %arg6[%c0_11, %c0_12] : memref<4x256xf32, #tpu.memory_space<vmem>>, vector<4x256xf32>
      tpu.vector_store %arg6[%c0_11, %c0_12], %12 {strides = array<i32>} : memref<4x256xf32, #tpu.memory_space<vmem>>, vector<4x256xf32>,
    } else {
    }
    %c0 = arith.constant 0 : index
    %c0_1 = arith.constant 0 : index
    %3 = vector.load %arg6[%c0, %c0_1] : memref<4x256xf32, #tpu.memory_space<vmem>>, vector<4x256xf32>
    %c0_2 = arith.constant 0 : index
    %c0_3 = arith.constant 0 : index
    %4 = vector.load %arg2[%c0_2, %c0_3] : memref<4x1024xbf16, #tpu.memory_space<vmem>>, vector<4x1024xbf16>
    %c0_4 = arith.constant 0 : index
    %c0_5 = arith.constant 0 : index
    %5 = vector.load %arg3[%c0_4, %c0_5] : memref<1024x256xbf16, #tpu.memory_space<vmem>>, vector<1024x256xbf16>
    %cst = arith.constant dense<0.000000e+00> : vector<4x256xf32>
    %6 = tpu.matmul %4, %5, %cst {dimension_numbers = #tpu.dot_dimension_numbers<[1], [0], [0], [1], [0, 0, 1, 1], [], []>} : vector<4x1024xbf16>, vector<1024x256xbf16>, vector<4x256xf32> -> vector<4x256xf32>
    %7 = arith.addf %3, %6 : vector<4x256xf32>
    %c0_6 = arith.constant 0 : index
    %c0_7 = arith.constant 0 : index
    %8 = vector.load %arg6[%c0_6, %c0_7] : memref<4x256xf32, #tpu.memory_space<vmem>>, vector<4x256xf32>
    tpu.vector_store %arg6[%c0_6, %c0_7], %7 {strides = array<i32>} : memref<4x256xf32, #tpu.memory_space<vmem>>, vector<4x256xf32>,
    %c0_i32_8 = arith.constant 0 : i32
    %9 = arith.cmpi eq, %arg1, %c0_i32_8 : i32
    %10 = arith.extui %9 : i1 to i32
    %c0_i32_9 = arith.constant 0 : i32
    %11 = arith.cmpi ne, %10, %c0_i32_9 : i32
    scf.if %11 {
      %c0_10 = arith.constant 0 : index
      %c0_11 = arith.constant 0 : index
      %12 = vector.load %arg6[%c0_10, %c0_11] : memref<4x256xf32, #tpu.memory_space<vmem>>, vector<4x256xf32>
      %c0_12 = arith.constant 0 : index
      %c0_13 = arith.constant 0 : index
      %13 = vector.load %arg4[%c0_12, %c0_13] : memref<1x256xf32, #tpu.memory_space<vmem>>, vector<1x256xf32>
      %14 = vector.broadcast %13 : vector<1x256xf32> to vector<4x256xf32>
      %15 = arith.addf %12, %14 : vector<4x256xf32>
      %cst_14 = arith.constant 0.000000e+00 : f32
      %16 = vector.broadcast %cst_14 : f32 to vector<4x256xf32>
      %17 = arith.maximumf %15, %16 : vector<4x256xf32>
      %18 = arith.truncf %17 : vector<4x256xf32> to vector<4x256xbf16>
      %c0_15 = arith.constant 0 : index
      %c0_16 = arith.constant 0 : index
      %19 = vector.load %arg5[%c0_15, %c0_16] : memref<4x256xbf16, #tpu.memory_space<vmem>>, vector<4x256xbf16>
      tpu.vector_store %arg5[%c0_15, %c0_16], %18 {strides = array<i32>} : memref<4x256xbf16, #tpu.memory_space<vmem>>, vector<4x256xbf16>,
    } else {
    }
    return
  }
  func.func @transform_0(%arg0: i32, %arg1: i32) -> (i32, i32) {
    %c0_i32 = arith.constant 0 : i32
    return %arg0, %arg1 : i32, i32
  }
  func.func @transform_1(%arg0: i32, %arg1: i32) -> (i32, i32) {
    %c0_i32 = arith.constant 0 : i32
    %c0_i32_0 = arith.constant 0 : i32
    return %arg1, %c0_i32 : i32, i32
  }
  func.func @transform_2(%arg0: i32, %arg1: i32) -> (i32, i32) {
    %c0_i32 = arith.constant 0 : i32
    %c0_i32_0 = arith.constant 0 : i32
    %c0_i32_1 = arith.constant 0 : i32
    return %c0_i32, %c0_i32_0 : i32, i32
  }
  func.func @transform_3(%arg0: i32, %arg1: i32) -> (i32, i32) {
    %c0_i32 = arith.constant 0 : i32
    %c0_i32_0 = arith.constant 0 : i32
    return %arg0, %c0_i32 : i32, i32
  }
}

</mosaic_0001>

<llo_original>
// kernel: tpu_custom_call.1
$region0: #{tpu_custom_call.1}
  #allocation0 [shape = 'u32[]', space=smem, size = 0x4, offset = 0x4, fixed_abs, tag = 'smem constant byte address 0x4 - core index']
  #allocation1 [shape = 'u32[72,128]{1,0:T(1,128)}', space=vmem, size = 0x9000, scoped, tag = 'internal scratch']
  #allocation2 [shape = 'f32[4,256]{1,0:T(4,128)}', space=vmem, size = 0x1000, scoped, tag = 'scratch operand']
  %s0 = inlined_call_operand.hbm [shape: bf16[4,1024], index: 0, kind: input, shape index: {}]
  %s1 = inlined_call_operand.hbm [shape: bf16[1024,256], index: 1, kind: input, shape index: {}]
  %s2 = inlined_call_operand.hbm [shape: f32[1,256], index: 2, kind: input, shape index: {}]
  %s3 = inlined_call_operand.hbm [shape: bf16[4,256], index: 3, kind: output, shape index: {}]
  %s4 = sld [smem:[#allocation0]]
  $region42: #{tpu_custom_call.1} parent=0
    _
  %s6 = ssub.s32 1, %s4
  %s7 = scalar_select 0, %s6, %s4
  $region1: #{tpu_custom_call.1} parent=0
    #allocation3 [shape = 'u8[8192]{0}', space=vmem, size = 0x2000, scoped, tag = 'input window, operand 0, single buffered']
    #allocation4 [shape = 's32[1]{0}', space=sflag, size = 0x4, scoped, tag = 'scoped memory for tpu_custom_call.1']
    #allocation5 [shape = 's32[1]{0}', space=sflag, size = 0x4, scoped, tag = 'scoped memory for tpu_custom_call.1']
    #allocation6 [shape = 'u8[524288]{0}', space=vmem, size = 0x80000, scoped, tag = 'input window, operand 1, single buffered']
    #allocation7 [shape = 's32[1]{0}', space=sflag, size = 0x4, scoped, tag = 'scoped memory for tpu_custom_call.1']
    #allocation8 [shape = 'u8[1024]{0}', space=vmem, size = 0x400, scoped, tag = 'input window, operand 2, single buffered']
    #allocation9 [shape = 'u8[2048]{0}', space=vmem, size = 0x800, scoped, tag = 'output window, operand 0, single buffered']
    %8 = vsyncpa [#allocation4], 0
    %9 = vsyncpa [#allocation7], 0
    %10 = vsyncpa [#allocation5], 0
    // Predicated region
    $region2: #{tpu_custom_call.1} parent=1 // pred_check
      _
    $region3: #{tpu_custom_call.1} parent=1 // pred_check_branch
      %12 = sbr.rel (0) target = $region5
    $region4: #{tpu_custom_call.1} parent=1 // pred_region
      %14 = vsyncadd [#allocation4], 0
      %s16 = sshll.u32 %s0, 4
      %s17 = int_to_ptr.hbm [resolvable:$true] %s16
      %s18 = sshll.u32 [#allocation3], 4
      %s19 = int_to_ptr.vmem [resolvable:$true] %s18
      %21 = dma.hbm_to_vmem [thread:$0]  %s17, 256, %s19, [#allocation4]
    $region5: #{tpu_custom_call.1} parent=1 // pred_fallthru
      _
    // Predicated region
    $region6: #{tpu_custom_call.1} parent=1 // pred_check
      _
    $region7: #{tpu_custom_call.1} parent=1 // pred_check_branch
      %23 = sbr.rel (0) target = $region9
    $region8: #{tpu_custom_call.1} parent=1 // pred_region
      %25 = vsyncadd [#allocation7], 0
      %s26 = sshll.u32 %s1, 4
      %s27 = int_to_ptr.hbm [resolvable:$true] %s26
      %s28 = sshll.u32 [#allocation6], 4
      %s29 = int_to_ptr.vmem [resolvable:$true] %s28
      %34 = dma.hbm_to_vmem [thread:$0]  %s27, 16384, %s29, [#allocation7], 128, 128, 8
    $region9: #{tpu_custom_call.1} parent=1 // pred_fallthru
      _
    // Predicated region
    $region10: #{tpu_custom_call.1} parent=1 // pred_check
      _
    $region11: #{tpu_custom_call.1} parent=1 // pred_check_branch
      %36 = sbr.rel (0) target = $region13
    $region12: #{tpu_custom_call.1} parent=1 // pred_region
      %38 = vsyncadd [#allocation7], 0
      %s40 = sshll.u32 %s2, 4
      %s41 = int_to_ptr.hbm [resolvable:$true] %s40
      %s42 = sshll.u32 [#allocation8], 4
      %s43 = int_to_ptr.vmem [resolvable:$true] %s42
      %45 = dma.hbm_to_vmem [thread:$0]  %s41, 32, %s43, [#allocation7]
    $region13: #{tpu_custom_call.1} parent=1 // pred_fallthru
      _
    // Predicated region
    $region14: #{tpu_custom_call.1} parent=1 // pred_check
      _
    $region15: #{tpu_custom_call.1} parent=1 // pred_check_branch
      %47 = sbr.rel (0) target = $region17
    $region16: #{tpu_custom_call.1} parent=1 // pred_region
      %49 = dma.done [#allocation4], 256
    $region17: #{tpu_custom_call.1} parent=1 // pred_fallthru
      _
    // Predicated region
    $region18: #{tpu_custom_call.1} parent=1 // pred_check
      _
    $region19: #{tpu_custom_call.1} parent=1 // pred_check_branch
      %51 = sbr.rel (0) target = $region21
    $region20: #{tpu_custom_call.1} parent=1 // pred_region
      %53 = dma.done [#allocation7], 16384
    $region21: #{tpu_custom_call.1} parent=1 // pred_fallthru
      _
    // Predicated region
    $region22: #{tpu_custom_call.1} parent=1 // pred_check
      _
    $region23: #{tpu_custom_call.1} parent=1 // pred_check_branch
      %55 = sbr.rel (0) target = $region25
    $region24: #{tpu_custom_call.1} parent=1 // pred_region
      %57 = dma.done [#allocation7], 32
    $region25: #{tpu_custom_call.1} parent=1 // pred_fallthru
      _
    %p58 = scmp.eq.s32.totalorder 0, 0
    // Predicated region
    $region26: #{tpu_custom_call.1} parent=1 // pred_check
      %p59 = pneg %p58
    $region27: #{tpu_custom_call.1} parent=1 // pred_check_branch
      %61 = sbr.rel (%p59) target = $region29
    $region28: #{tpu_custom_call.1} parent=1 // pred_region
      %62 = vst [vmem:[#allocation2] sm:$0xff] 0.0
    $region29: #{tpu_custom_call.1} parent=1 // pred_fallthru
      _
    %v63 = vld [vmem:[#allocation2] sm:$0xff]
    %v64 = vld [vmem:[#allocation3] sm:$0xff]
    %v65 = vld [vmem:[#allocation3 + $0x8] sm:$0xff]
    %v66 = vld [vmem:[#allocation6] sm:$0xff]
    %v67 = vld [vmem:[#allocation6 + $0x8] sm:$0xff]
    %v68 = vld [vmem:[#allocation6 + $0x10] sm:$0xff]
    %v69 = vld [vmem:[#allocation6 + $0x18] sm:$0xff]
    %v70 = vld [vmem:[#allocation6 + $0x20] sm:$0xff]
    %v71 = vld [vmem:[#allocation6 + $0x28] sm:$0xff]
    %v72 = vld [vmem:[#allocation6 + $0x30] sm:$0xff]
    %v73 = vld [vmem:[#allocation6 + $0x38] sm:$0xff]
    %v74 = vld [vmem:[#allocation6 + $0x40] sm:$0xff]
    %v75 = vld [vmem:[#allocation6 + $0x48] sm:$0xff]
    %v76 = vld [vmem:[#allocation6 + $0x50] sm:$0xff]
    %v77 = vld [vmem:[#allocation6 + $0x58] sm:$0xff]
    %v78 = vld [vmem:[#allocation6 + $0x60] sm:$0xff]
    %v79 = vld [vmem:[#allocation6 + $0x68] sm:$0xff]
    %v80 = vld [vmem:[#allocation6 + $0x70] sm:$0xff]
    %v81 = vld [vmem:[#allocation6 + $0x78] sm:$0xff]
    %v82 = vld [vmem:[#allocation6 + $0x80] sm:$0xff]
    %v83 = vld [vmem:[#allocation6 + $0x88] sm:$0xff]
    %v84 = vld [vmem:[#allocation6 + $0x90] sm:$0xff]
    %v85 = vld [vmem:[#allocation6 + $0x98] sm:$0xff]
    %v86 = vld [vmem:[#allocation6 + $0xa0] sm:$0xff]
    %v87 = vld [vmem:[#allocation6 + $0xa8] sm:$0xff]
    %v88 = vld [vmem:[#allocation6 + $0xb0] sm:$0xff]
    %v89 = vld [vmem:[#allocation6 + $0xb8] sm:$0xff]
    %v90 = vld [vmem:[#allocation6 + $0xc0] sm:$0xff]
    %v91 = vld [vmem:[#allocation6 + $0xc8] sm:$0xff]
    %v92 = vld [vmem:[#allocation6 + $0xd0] sm:$0xff]
    %v93 = vld [vmem:[#allocation6 + $0xd8] sm:$0xff]
    %v94 = vld [vmem:[#allocation6 + $0xe0] sm:$0xff]
    %v95 = vld [vmem:[#allocation6 + $0xe8] sm:$0xff]
    %v96 = vld [vmem:[#allocation6 + $0xf0] sm:$0xff]
    %v97 = vld [vmem:[#allocation6 + $0xf8] sm:$0xff]
    %v98 = vld [vmem:[#allocation6 + $0x100] sm:$0xff]
    %v99 = vld [vmem:[#allocation6 + $0x108] sm:$0xff]
    %v100 = vld [vmem:[#allocation6 + $0x110] sm:$0xff]
    %v101 = vld [vmem:[#allocation6 + $0x118] sm:$0xff]
    %v102 = vld [vmem:[#allocation6 + $0x120] sm:$0xff]
    %v103 = vld [vmem:[#allocation6 + $0x128] sm:$0xff]
    %v104 = vld [vmem:[#allocation6 + $0x130] sm:$0xff]
    %v105 = vld [vmem:[#allocation6 + $0x138] sm:$0xff]
    %v106 = vld [vmem:[#allocation6 + $0x140] sm:$0xff]
    %v107 = vld [vmem:[#allocation6 + $0x148] sm:$0xff]
    %v108 = vld [vmem:[#allocation6 + $0x150] sm:$0xff]
    %v109 = vld [vmem:[#allocation6 + $0x158] sm:$0xff]
    %v110 = vld [vmem:[#allocation6 + $0x160] sm:$0xff]
    %v111 = vld [vmem:[#allocation6 + $0x168] sm:$0xff]
    %v112 = vld [vmem:[#allocation6 + $0x170] sm:$0xff]
    %v113 = vld [vmem:[#allocation6 + $0x178] sm:$0xff]
    %v114 = vld [vmem:[#allocation6 + $0x180] sm:$0xff]
    %v115 = vld [vmem:[#allocation6 + $0x188] sm:$0xff]
    %v116 = vld [vmem:[#allocation6 + $0x190] sm:$0xff]
    %v117 = vld [vmem:[#allocation6 + $0x198] sm:$0xff]
    %v118 = vld [vmem:[#allocation6 + $0x1a0] sm:$0xff]
    %v119 = vld [vmem:[#allocation6 + $0x1a8] sm:$0xff]
    %v120 = vld [vmem:[#allocation6 + $0x1b0] sm:$0xff]
    %v121 = vld [vmem:[#allocation6 + $0x1b8] sm:$0xff]
    %v122 = vld [vmem:[#allocation6 + $0x1c0] sm:$0xff]
    %v123 = vld [vmem:[#allocation6 + $0x1c8] sm:$0xff]
    %v124 = vld [vmem:[#allocation6 + $0x1d0] sm:$0xff]
    %v125 = vld [vmem:[#allocation6 + $0x1d8] sm:$0xff]
    %v126 = vld [vmem:[#allocation6 + $0x1e0] sm:$0xff]
    %v127 = vld [vmem:[#allocation6 + $0x1e8] sm:$0xff]
    %v128 = vld [vmem:[#allocation6 + $0x1f0] sm:$0xff]
    %v129 = vld [vmem:[#allocation6 + $0x1f8] sm:$0xff]
    %v130 = vld [vmem:[#allocation6 + $0x200] sm:$0xff]
    %v131 = vld [vmem:[#allocation6 + $0x208] sm:$0xff]
    %v132 = vld [vmem:[#allocation6 + $0x210] sm:$0xff]
    %v133 = vld [vmem:[#allocation6 + $0x218] sm:$0xff]
    %v134 = vld [vmem:[#allocation6 + $0x220] sm:$0xff]
    %v135 = vld [vmem:[#allocation6 + $0x228] sm:$0xff]
    %v136 = vld [vmem:[#allocation6 + $0x230] sm:$0xff]
    %v137 = vld [vmem:[#allocation6 + $0x238] sm:$0xff]
    %v138 = vld [vmem:[#allocation6 + $0x240] sm:$0xff]
    %v139 = vld [vmem:[#allocation6 + $0x248] sm:$0xff]
    %v140 = vld [vmem:[#allocation6 + $0x250] sm:$0xff]
    %v141 = vld [vmem:[#allocation6 + $0x258] sm:$0xff]
    %v142 = vld [vmem:[#allocation6 + $0x260] sm:$0xff]
    %v143 = vld [vmem:[#allocation6 + $0x268] sm:$0xff]
    %v144 = vld [vmem:[#allocation6 + $0x270] sm:$0xff]
    %v145 = vld [vmem:[#allocation6 + $0x278] sm:$0xff]
    %v146 = vld [vmem:[#allocation6 + $0x280] sm:$0xff]
    %v147 = vld [vmem:[#allocation6 + $0x288] sm:$0xff]
    %v148 = vld [vmem:[#allocation6 + $0x290] sm:$0xff]
    %v149 = vld [vmem:[#allocation6 + $0x298] sm:$0xff]
    %v150 = vld [vmem:[#allocation6 + $0x2a0] sm:$0xff]
    %v151 = vld [vmem:[#allocation6 + $0x2a8] sm:$0xff]
    %v152 = vld [vmem:[#allocation6 + $0x2b0] sm:$0xff]
    %v153 = vld [vmem:[#allocation6 + $0x2b8] sm:$0xff]
    %v154 = vld [vmem:[#allocation6 + $0x2c0] sm:$0xff]
    %v155 = vld [vmem:[#allocation6 + $0x2c8] sm:$0xff]
    %v156 = vld [vmem:[#allocation6 + $0x2d0] sm:$0xff]
    %v157 = vld [vmem:[#allocation6 + $0x2d8] sm:$0xff]
    %v158 = vld [vmem:[#allocation6 + $0x2e0] sm:$0xff]
    %v159 = vld [vmem:[#allocation6 + $0x2e8] sm:$0xff]
    %v160 = vld [vmem:[#allocation6 + $0x2f0] sm:$0xff]
    %v161 = vld [vmem:[#allocation6 + $0x2f8] sm:$0xff]
    %v162 = vld [vmem:[#allocation6 + $0x300] sm:$0xff]
    %v163 = vld [vmem:[#allocation6 + $0x308] sm:$0xff]
    %v164 = vld [vmem:[#allocation6 + $0x310] sm:$0xff]
    %v165 = vld [vmem:[#allocation6 + $0x318] sm:$0xff]
    %v166 = vld [vmem:[#allocation6 + $0x320] sm:$0xff]
    %v167 = vld [vmem:[#allocation6 + $0x328] sm:$0xff]
    %v168 = vld [vmem:[#allocation6 + $0x330] sm:$0xff]
    %v169 = vld [vmem:[#allocation6 + $0x338] sm:$0xff]
    %v170 = vld [vmem:[#allocation6 + $0x340] sm:$0xff]
    %v171 = vld [vmem:[#allocation6 + $0x348] sm:$0xff]
    %v172 = vld [vmem:[#allocation6 + $0x350] sm:$0xff]
    %v173 = vld [vmem:[#allocation6 + $0x358] sm:$0xff]
    %v174 = vld [vmem:[#allocation6 + $0x360] sm:$0xff]
    %v175 = vld [vmem:[#allocation6 + $0x368] sm:$0xff]
    %v176 = vld [vmem:[#allocation6 + $0x370] sm:$0xff]
    %v177 = vld [vmem:[#allocation6 + $0x378] sm:$0xff]
    %v178 = vld [vmem:[#allocation6 + $0x380] sm:$0xff]
    %v179 = vld [vmem:[#allocation6 + $0x388] sm:$0xff]
    %v180 = vld [vmem:[#allocation6 + $0x390] sm:$0xff]
    %v181 = vld [vmem:[#allocation6 + $0x398] sm:$0xff]
    %v182 = vld [vmem:[#allocation6 + $0x3a0] sm:$0xff]
    %v183 = vld [vmem:[#allocation6 + $0x3a8] sm:$0xff]
    %v184 = vld [vmem:[#allocation6 + $0x3b0] sm:$0xff]
    %v185 = vld [vmem:[#allocation6 + $0x3b8] sm:$0xff]
    %v186 = vld [vmem:[#allocation6 + $0x3c0] sm:$0xff]
    %v187 = vld [vmem:[#allocation6 + $0x3c8] sm:$0xff]
    %v188 = vld [vmem:[#allocation6 + $0x3d0] sm:$0xff]
    %v189 = vld [vmem:[#allocation6 + $0x3d8] sm:$0xff]
    %v190 = vld [vmem:[#allocation6 + $0x3e0] sm:$0xff]
    %v191 = vld [vmem:[#allocation6 + $0x3e8] sm:$0xff]
    %v192 = vld [vmem:[#allocation6 + $0x3f0] sm:$0xff]
    %v193 = vld [vmem:[#allocation6 + $0x3f8] sm:$0xff]
    %195 = vst [vmem:[#allocation1] ss:$4 sm:$0xff] %v64
    %s197 = scalar_lea.vmem [#allocation1], 32
    %198 = vst [vmem:[%s197] ss:$4 sm:$0xff] %v65
    %v199 = vld.sshfl [vmem:[#allocation1] sm:$0xff pattern:$0x73625140]
    %v200 = vld.sshfl [vmem:[#allocation1 + $0x8] sm:$0xff pattern:$0x73625140]
    %v201 = vld.sshfl [vmem:[#allocation1 + $0x10] sm:$0xff pattern:$0x73625140]
    %v202 = vld.sshfl [vmem:[#allocation1 + $0x18] sm:$0xff pattern:$0x73625140]
    %v203 = vld.sshfl [vmem:[#allocation1 + $0x20] sm:$0xff pattern:$0x73625140]
    %v204 = vld.sshfl [vmem:[#allocation1 + $0x28] sm:$0xff pattern:$0x73625140]
    %v205 = vld.sshfl [vmem:[#allocation1 + $0x30] sm:$0xff pattern:$0x73625140]
    %v206 = vld.sshfl [vmem:[#allocation1 + $0x38] sm:$0xff pattern:$0x73625140]
    %v343 = vunpack.c.l.b16 %v66
    %v344 = vunpack.c.h.b16 %v66
    %v345 = vunpack.c.l.b16 %v67
    %v346 = vunpack.c.h.b16 %v67
    %v347 = vunpack.c.l.b16 %v68
    %v348 = vunpack.c.h.b16 %v68
    %v349 = vunpack.c.l.b16 %v69
    %v350 = vunpack.c.h.b16 %v69
    %v351 = vunpack.c.l.b16 %v70
    %v352 = vunpack.c.h.b16 %v70
    %v353 = vunpack.c.l.b16 %v71
    %v354 = vunpack.c.h.b16 %v71
    %v355 = vunpack.c.l.b16 %v72
    %v356 = vunpack.c.h.b16 %v72
    %v357 = vunpack.c.l.b16 %v73
    %v358 = vunpack.c.h.b16 %v73
    %v359 = vunpack.c.l.b16 %v74
    %v360 = vunpack.c.h.b16 %v74
    %v361 = vunpack.c.l.b16 %v75
    %v362 = vunpack.c.h.b16 %v75
    %v363 = vunpack.c.l.b16 %v76
    %v364 = vunpack.c.h.b16 %v76
    %v365 = vunpack.c.l.b16 %v77
    %v366 = vunpack.c.h.b16 %v77
    %v367 = vunpack.c.l.b16 %v78
    %v368 = vunpack.c.h.b16 %v78
    %v369 = vunpack.c.l.b16 %v79
    %v370 = vunpack.c.h.b16 %v79
    %v371 = vunpack.c.l.b16 %v80
    %v372 = vunpack.c.h.b16 %v80
    %v373 = vunpack.c.l.b16 %v81
    %v374 = vunpack.c.h.b16 %v81
    %v375 = vunpack.c.l.b16 %v82
    %v376 = vunpack.c.h.b16 %v82
    %v377 = vunpack.c.l.b16 %v83
    %v378 = vunpack.c.h.b16 %v83
    %v379 = vunpack.c.l.b16 %v84
    %v380 = vunpack.c.h.b16 %v84
    %v381 = vunpack.c.l.b16 %v85
    %v382 = vunpack.c.h.b16 %v85
    %v383 = vunpack.c.l.b16 %v86
    %v384 = vunpack.c.h.b16 %v86
    %v385 = vunpack.c.l.b16 %v87
    %v386 = vunpack.c.h.b16 %v87
    %v387 = vunpack.c.l.b16 %v88
    %v388 = vunpack.c.h.b16 %v88
    %v389 = vunpack.c.l.b16 %v89
    %v390 = vunpack.c.h.b16 %v89
    %v391 = vunpack.c.l.b16 %v90
    %v392 = vunpack.c.h.b16 %v90
    %v393 = vunpack.c.l.b16 %v91
    %v394 = vunpack.c.h.b16 %v91
    %v395 = vunpack.c.l.b16 %v92
    %v396 = vunpack.c.h.b16 %v92
    %v397 = vunpack.c.l.b16 %v93
    %v398 = vunpack.c.h.b16 %v93
    %v399 = vunpack.c.l.b16 %v94
    %v400 = vunpack.c.h.b16 %v94
    %v401 = vunpack.c.l.b16 %v95
    %v402 = vunpack.c.h.b16 %v95
    %v403 = vunpack.c.l.b16 %v96
    %v404 = vunpack.c.h.b16 %v96
    %v405 = vunpack.c.l.b16 %v97
    %v406 = vunpack.c.h.b16 %v97
    %v407 = vunpack.c.l.b16 %v98
    %v408 = vunpack.c.h.b16 %v98
    %v409 = vunpack.c.l.b16 %v99
    %v410 = vunpack.c.h.b16 %v99
    %v411 = vunpack.c.l.b16 %v100
    %v412 = vunpack.c.h.b16 %v100
    %v413 = vunpack.c.l.b16 %v101
    %v414 = vunpack.c.h.b16 %v101
    %v415 = vunpack.c.l.b16 %v102
    %v416 = vunpack.c.h.b16 %v102
    %v417 = vunpack.c.l.b16 %v103
    %v418 = vunpack.c.h.b16 %v103
    %v419 = vunpack.c.l.b16 %v104
    %v420 = vunpack.c.h.b16 %v104
    %v421 = vunpack.c.l.b16 %v105
    %v422 = vunpack.c.h.b16 %v105
    %v423 = vunpack.c.l.b16 %v106
    %v424 = vunpack.c.h.b16 %v106
    %v425 = vunpack.c.l.b16 %v107
    %v426 = vunpack.c.h.b16 %v107
    %v427 = vunpack.c.l.b16 %v108
    %v428 = vunpack.c.h.b16 %v108
    %v429 = vunpack.c.l.b16 %v109
    %v430 = vunpack.c.h.b16 %v109
    %v431 = vunpack.c.l.b16 %v110
    %v432 = vunpack.c.h.b16 %v110
    %v433 = vunpack.c.l.b16 %v111
    %v434 = vunpack.c.h.b16 %v111
    %v435 = vunpack.c.l.b16 %v112
    %v436 = vunpack.c.h.b16 %v112
    %v437 = vunpack.c.l.b16 %v113
    %v438 = vunpack.c.h.b16 %v113
    %v439 = vunpack.c.l.b16 %v114
    %v440 = vunpack.c.h.b16 %v114
    %v441 = vunpack.c.l.b16 %v115
    %v442 = vunpack.c.h.b16 %v115
    %v443 = vunpack.c.l.b16 %v116
    %v444 = vunpack.c.h.b16 %v116
    %v445 = vunpack.c.l.b16 %v117
    %v446 = vunpack.c.h.b16 %v117
    %v447 = vunpack.c.l.b16 %v118
    %v448 = vunpack.c.h.b16 %v118
    %v449 = vunpack.c.l.b16 %v119
    %v450 = vunpack.c.h.b16 %v119
    %v451 = vunpack.c.l.b16 %v120
    %v452 = vunpack.c.h.b16 %v120
    %v453 = vunpack.c.l.b16 %v121
    %v454 = vunpack.c.h.b16 %v121
    %v455 = vunpack.c.l.b16 %v122
    %v456 = vunpack.c.h.b16 %v122
    %v457 = vunpack.c.l.b16 %v123
    %v458 = vunpack.c.h.b16 %v123
    %v459 = vunpack.c.l.b16 %v124
    %v460 = vunpack.c.h.b16 %v124
    %v461 = vunpack.c.l.b16 %v125
    %v462 = vunpack.c.h.b16 %v125
    %v463 = vunpack.c.l.b16 %v126
    %v464 = vunpack.c.h.b16 %v126
    %v465 = vunpack.c.l.b16 %v127
    %v466 = vunpack.c.h.b16 %v127
    %v467 = vunpack.c.l.b16 %v128
    %v468 = vunpack.c.h.b16 %v128
    %v469 = vunpack.c.l.b16 %v129
    %v470 = vunpack.c.h.b16 %v129
    %v471 = vunpack.c.l.b16 %v130
    %v472 = vunpack.c.h.b16 %v130
    %v473 = vunpack.c.l.b16 %v131
    %v474 = vunpack.c.h.b16 %v131
    %v475 = vunpack.c.l.b16 %v132
    %v476 = vunpack.c.h.b16 %v132
    %v477 = vunpack.c.l.b16 %v133
    %v478 = vunpack.c.h.b16 %v133
    %v479 = vunpack.c.l.b16 %v134
    %v480 = vunpack.c.h.b16 %v134
    %v481 = vunpack.c.l.b16 %v135
    %v482 = vunpack.c.h.b16 %v135
    %v483 = vunpack.c.l.b16 %v136
    %v484 = vunpack.c.h.b16 %v136
    %v485 = vunpack.c.l.b16 %v137
    %v486 = vunpack.c.h.b16 %v137
    %v487 = vunpack.c.l.b16 %v138
    %v488 = vunpack.c.h.b16 %v138
    %v489 = vunpack.c.l.b16 %v139
    %v490 = vunpack.c.h.b16 %v139
    %v491 = vunpack.c.l.b16 %v140
    %v492 = vunpack.c.h.b16 %v140
    %v493 = vunpack.c.l.b16 %v141
    %v494 = vunpack.c.h.b16 %v141
    %v495 = vunpack.c.l.b16 %v142
    %v496 = vunpack.c.h.b16 %v142
    %v497 = vunpack.c.l.b16 %v143
    %v498 = vunpack.c.h.b16 %v143
    %v499 = vunpack.c.l.b16 %v144
    %v500 = vunpack.c.h.b16 %v144
    %v501 = vunpack.c.l.b16 %v145
    %v502 = vunpack.c.h.b16 %v145
    %v503 = vunpack.c.l.b16 %v146
    %v504 = vunpack.c.h.b16 %v146
    %v505 = vunpack.c.l.b16 %v147
    %v506 = vunpack.c.h.b16 %v147
    %v507 = vunpack.c.l.b16 %v148
    %v508 = vunpack.c.h.b16 %v148
    %v509 = vunpack.c.l.b16 %v149
    %v510 = vunpack.c.h.b16 %v149
    %v511 = vunpack.c.l.b16 %v150
    %v512 = vunpack.c.h.b16 %v150
    %v513 = vunpack.c.l.b16 %v151
    %v514 = vunpack.c.h.b16 %v151
    %v515 = vunpack.c.l.b16 %v152
    %v516 = vunpack.c.h.b16 %v152
    %v517 = vunpack.c.l.b16 %v153
    %v518 = vunpack.c.h.b16 %v153
    %v519 = vunpack.c.l.b16 %v154
    %v520 = vunpack.c.h.b16 %v154
    %v521 = vunpack.c.l.b16 %v155
    %v522 = vunpack.c.h.b16 %v155
    %v523 = vunpack.c.l.b16 %v156
    %v524 = vunpack.c.h.b16 %v156
    %v525 = vunpack.c.l.b16 %v157
    %v526 = vunpack.c.h.b16 %v157
    %v527 = vunpack.c.l.b16 %v158
    %v528 = vunpack.c.h.b16 %v158
    %v529 = vunpack.c.l.b16 %v159
    %v530 = vunpack.c.h.b16 %v159
    %v531 = vunpack.c.l.b16 %v160
    %v532 = vunpack.c.h.b16 %v160
    %v533 = vunpack.c.l.b16 %v161
    %v534 = vunpack.c.h.b16 %v161
    %v535 = vunpack.c.l.b16 %v162
    %v536 = vunpack.c.h.b16 %v162
    %v537 = vunpack.c.l.b16 %v163
    %v538 = vunpack.c.h.b16 %v163
    %v539 = vunpack.c.l.b16 %v164
    %v540 = vunpack.c.h.b16 %v164
    %v541 = vunpack.c.l.b16 %v165
    %v542 = vunpack.c.h.b16 %v165
    %v543 = vunpack.c.l.b16 %v166
    %v544 = vunpack.c.h.b16 %v166
    %v545 = vunpack.c.l.b16 %v167
    %v546 = vunpack.c.h.b16 %v167
    %v547 = vunpack.c.l.b16 %v168
    %v548 = vunpack.c.h.b16 %v168
    %v549 = vunpack.c.l.b16 %v169
    %v550 = vunpack.c.h.b16 %v169
    %v551 = vunpack.c.l.b16 %v170
    %v552 = vunpack.c.h.b16 %v170
    %v553 = vunpack.c.l.b16 %v171
    %v554 = vunpack.c.h.b16 %v171
    %v555 = vunpack.c.l.b16 %v172
    %v556 = vunpack.c.h.b16 %v172
    %v557 = vunpack.c.l.b16 %v173
    %v558 = vunpack.c.h.b16 %v173
    %v559 = vunpack.c.l.b16 %v174
    %v560 = vunpack.c.h.b16 %v174
    %v561 = vunpack.c.l.b16 %v175
    %v562 = vunpack.c.h.b16 %v175
    %v563 = vunpack.c.l.b16 %v176
    %v564 = vunpack.c.h.b16 %v176
    %v565 = vunpack.c.l.b16 %v177
    %v566 = vunpack.c.h.b16 %v177
    %v567 = vunpack.c.l.b16 %v178
    %v568 = vunpack.c.h.b16 %v178
    %v569 = vunpack.c.l.b16 %v179
    %v570 = vunpack.c.h.b16 %v179
    %v571 = vunpack.c.l.b16 %v180
    %v572 = vunpack.c.h.b16 %v180
    %v573 = vunpack.c.l.b16 %v181
    %v574 = vunpack.c.h.b16 %v181
    %v575 = vunpack.c.l.b16 %v182
    %v576 = vunpack.c.h.b16 %v182
    %v577 = vunpack.c.l.b16 %v183
    %v578 = vunpack.c.h.b16 %v183
    %v579 = vunpack.c.l.b16 %v184
    %v580 = vunpack.c.h.b16 %v184
    %v581 = vunpack.c.l.b16 %v185
    %v582 = vunpack.c.h.b16 %v185
    %v583 = vunpack.c.l.b16 %v186
    %v584 = vunpack.c.h.b16 %v186
    %v585 = vunpack.c.l.b16 %v187
    %v586 = vunpack.c.h.b16 %v187
    %v587 = vunpack.c.l.b16 %v188
    %v588 = vunpack.c.h.b16 %v188
    %v589 = vunpack.c.l.b16 %v189
    %v590 = vunpack.c.h.b16 %v189
    %v591 = vunpack.c.l.b16 %v190
    %v592 = vunpack.c.h.b16 %v190
    %v593 = vunpack.c.l.b16 %v191
    %v594 = vunpack.c.h.b16 %v191
    %v595 = vunpack.c.l.b16 %v192
    %v596 = vunpack.c.h.b16 %v192
    %v597 = vunpack.c.l.b16 %v193
    %v598 = vunpack.c.h.b16 %v193
    %v599 = vpack.c.b16 %v345, %v343
    %v600 = vpack.c.b16 %v346, %v344
    %v601 = vpack.c.b16 %v349, %v347
    %v602 = vpack.c.b16 %v350, %v348
    %v603 = vpack.c.b16 %v353, %v351
    %v604 = vpack.c.b16 %v354, %v352
    %v605 = vpack.c.b16 %v357, %v355
    %v606 = vpack.c.b16 %v358, %v356
    %v607 = vpack.c.b16 %v361, %v359
    %v608 = vpack.c.b16 %v362, %v360
    %v609 = vpack.c.b16 %v365, %v363
    %v610 = vpack.c.b16 %v366, %v364
    %v611 = vpack.c.b16 %v369, %v367
    %v612 = vpack.c.b16 %v370, %v368
    %v613 = vpack.c.b16 %v373, %v371
    %v614 = vpack.c.b16 %v374, %v372
    %v615 = vpack.c.b16 %v377, %v375
    %v616 = vpack.c.b16 %v378, %v376
    %v617 = vpack.c.b16 %v381, %v379
    %v618 = vpack.c.b16 %v382, %v380
    %v619 = vpack.c.b16 %v385, %v383
    %v620 = vpack.c.b16 %v386, %v384
    %v621 = vpack.c.b16 %v389, %v387
    %v622 = vpack.c.b16 %v390, %v388
    %v623 = vpack.c.b16 %v393, %v391
    %v624 = vpack.c.b16 %v394, %v392
    %v625 = vpack.c.b16 %v397, %v395
    %v626 = vpack.c.b16 %v398, %v396
    %v627 = vpack.c.b16 %v401, %v399
    %v628 = vpack.c.b16 %v402, %v400
    %v629 = vpack.c.b16 %v405, %v403
    %v630 = vpack.c.b16 %v406, %v404
    %v631 = vpack.c.b16 %v409, %v407
    %v632 = vpack.c.b16 %v410, %v408
    %v633 = vpack.c.b16 %v413, %v411
    %v634 = vpack.c.b16 %v414, %v412
    %v635 = vpack.c.b16 %v417, %v415
    %v636 = vpack.c.b16 %v418, %v416
    %v637 = vpack.c.b16 %v421, %v419
    %v638 = vpack.c.b16 %v422, %v420
    %v639 = vpack.c.b16 %v425, %v423
    %v640 = vpack.c.b16 %v426, %v424
    %v641 = vpack.c.b16 %v429, %v427
    %v642 = vpack.c.b16 %v430, %v428
    %v643 = vpack.c.b16 %v433, %v431
    %v644 = vpack.c.b16 %v434, %v432
    %v645 = vpack.c.b16 %v437, %v435
    %v646 = vpack.c.b16 %v438, %v436
    %v647 = vpack.c.b16 %v441, %v439
    %v648 = vpack.c.b16 %v442, %v440
    %v649 = vpack.c.b16 %v445, %v443
    %v650 = vpack.c.b16 %v446, %v444
    %v651 = vpack.c.b16 %v449, %v447
    %v652 = vpack.c.b16 %v450, %v448
    %v653 = vpack.c.b16 %v453, %v451
    %v654 = vpack.c.b16 %v454, %v452
    %v655 = vpack.c.b16 %v457, %v455
    %v656 = vpack.c.b16 %v458, %v456
    %v657 = vpack.c.b16 %v461, %v459
    %v658 = vpack.c.b16 %v462, %v460
    %v659 = vpack.c.b16 %v465, %v463
    %v660 = vpack.c.b16 %v466, %v464
    %v661 = vpack.c.b16 %v469, %v467
    %v662 = vpack.c.b16 %v470, %v468
    %v663 = vpack.c.b16 %v473, %v471
    %v664 = vpack.c.b16 %v474, %v472
    %v665 = vpack.c.b16 %v477, %v475
    %v666 = vpack.c.b16 %v478, %v476
    %v667 = vpack.c.b16 %v481, %v479
    %v668 = vpack.c.b16 %v482, %v480
    %v669 = vpack.c.b16 %v485, %v483
    %v670 = vpack.c.b16 %v486, %v484
    %v671 = vpack.c.b16 %v489, %v487
    %v672 = vpack.c.b16 %v490, %v488
    %v673 = vpack.c.b16 %v493, %v491
    %v674 = vpack.c.b16 %v494, %v492
    %v675 = vpack.c.b16 %v497, %v495
    %v676 = vpack.c.b16 %v498, %v496
    %v677 = vpack.c.b16 %v501, %v499
    %v678 = vpack.c.b16 %v502, %v500
    %v679 = vpack.c.b16 %v505, %v503
    %v680 = vpack.c.b16 %v506, %v504
    %v681 = vpack.c.b16 %v509, %v507
    %v682 = vpack.c.b16 %v510, %v508
    %v683 = vpack.c.b16 %v513, %v511
    %v684 = vpack.c.b16 %v514, %v512
    %v685 = vpack.c.b16 %v517, %v515
    %v686 = vpack.c.b16 %v518, %v516
    %v687 = vpack.c.b16 %v521, %v519
    %v688 = vpack.c.b16 %v522, %v520
    %v689 = vpack.c.b16 %v525, %v523
    %v690 = vpack.c.b16 %v526, %v524
    %v691 = vpack.c.b16 %v529, %v527
    %v692 = vpack.c.b16 %v530, %v528
    %v693 = vpack.c.b16 %v533, %v531
    %v694 = vpack.c.b16 %v534, %v532
    %v695 = vpack.c.b16 %v537, %v535
    %v696 = vpack.c.b16 %v538, %v536
    %v697 = vpack.c.b16 %v541, %v539
    %v698 = vpack.c.b16 %v542, %v540
    %v699 = vpack.c.b16 %v545, %v543
    %v700 = vpack.c.b16 %v546, %v544
    %v701 = vpack.c.b16 %v549, %v547
    %v702 = vpack.c.b16 %v550, %v548
    %v703 = vpack.c.b16 %v553, %v551
    %v704 = vpack.c.b16 %v554, %v552
    %v705 = vpack.c.b16 %v557, %v555
    %v706 = vpack.c.b16 %v558, %v556
    %v707 = vpack.c.b16 %v561, %v559
    %v708 = vpack.c.b16 %v562, %v560
    %v709 = vpack.c.b16 %v565, %v563
    %v710 = vpack.c.b16 %v566, %v564
    %v711 = vpack.c.b16 %v569, %v567
    %v712 = vpack.c.b16 %v570, %v568
    %v713 = vpack.c.b16 %v573, %v571
    %v714 = vpack.c.b16 %v574, %v572
    %v715 = vpack.c.b16 %v577, %v575
    %v716 = vpack.c.b16 %v578, %v576
    %v717 = vpack.c.b16 %v581, %v579
    %v718 = vpack.c.b16 %v582, %v580
    %v719 = vpack.c.b16 %v585, %v583
    %v720 = vpack.c.b16 %v586, %v584
    %v721 = vpack.c.b16 %v589, %v587
    %v722 = vpack.c.b16 %v590, %v588
    %v723 = vpack.c.b16 %v593, %v591
    %v724 = vpack.c.b16 %v594, %v592
    %v725 = vpack.c.b16 %v597, %v595
    %v726 = vpack.c.b16 %v598, %v596
    %855 = vmatpush.bf16.msra.mxu0 %v613
    %856 = vmatpush.bf16.msra.mxu0 %v611
    %857 = vmatpush.bf16.msra.mxu0 %v609
    %858 = vmatpush.bf16.msra.mxu0 %v607
    %859 = vmatpush.bf16.msra.mxu0 %v605
    %860 = vmatpush.bf16.msra.mxu0 %v603
    %861 = vmatpush.bf16.msra.mxu0 %v601
    %862 = vmatpush.bf16.msra.mxu0 %v599
    %863 = vmatmul.bf16.gmra.mxu0 %v199
    %v864 = vpop.f32.mrf.mxu0
    %v865 = vadd.f32 0.0, %v864
    %v866 = vpop.f32.mrf.mxu0
    %867 = vdwg.mxu0
    %868 = vmatpush.bf16.msra.mxu0 %v629
    %869 = vmatpush.bf16.msra.mxu0 %v627
    %870 = vmatpush.bf16.msra.mxu0 %v625
    %871 = vmatpush.bf16.msra.mxu0 %v623
    %872 = vmatpush.bf16.msra.mxu0 %v621
    %873 = vmatpush.bf16.msra.mxu0 %v619
    %874 = vmatpush.bf16.msra.mxu0 %v617
    %875 = vmatpush.bf16.msra.mxu0 %v615
    %876 = vmatmul.bf16.gmra.mxu0 %v200
    %v877 = vpop.f32.mrf.mxu0
    %v878 = vadd.f32 %v865, %v877
    %v879 = vpop.f32.mrf.mxu0
    %880 = vdwg.mxu0
    %881 = vmatpush.bf16.msra.mxu0 %v645
    %882 = vmatpush.bf16.msra.mxu0 %v643
    %883 = vmatpush.bf16.msra.mxu0 %v641
    %884 = vmatpush.bf16.msra.mxu0 %v639
    %885 = vmatpush.bf16.msra.mxu0 %v637
    %886 = vmatpush.bf16.msra.mxu0 %v635
    %887 = vmatpush.bf16.msra.mxu0 %v633
    %888 = vmatpush.bf16.msra.mxu0 %v631
    %889 = vmatmul.bf16.gmra.mxu0 %v201
    %v890 = vpop.f32.mrf.mxu0
    %v891 = vadd.f32 %v878, %v890
    %v892 = vpop.f32.mrf.mxu0
    %893 = vdwg.mxu0
    %894 = vmatpush.bf16.msra.mxu0 %v661
    %895 = vmatpush.bf16.msra.mxu0 %v659
    %896 = vmatpush.bf16.msra.mxu0 %v657
    %897 = vmatpush.bf16.msra.mxu0 %v655
    %898 = vmatpush.bf16.msra.mxu0 %v653
    %899 = vmatpush.bf16.msra.mxu0 %v651
    %900 = vmatpush.bf16.msra.mxu0 %v649
    %901 = vmatpush.bf16.msra.mxu0 %v647
    %902 = vmatmul.bf16.gmra.mxu0 %v202
    %v903 = vpop.f32.mrf.mxu0
    %v904 = vadd.f32 %v891, %v903
    %v905 = vpop.f32.mrf.mxu0
    %906 = vdwg.mxu0
    %907 = vmatpush.bf16.msra.mxu0 %v677
    %908 = vmatpush.bf16.msra.mxu0 %v675
    %909 = vmatpush.bf16.msra.mxu0 %v673
    %910 = vmatpush.bf16.msra.mxu0 %v671
    %911 = vmatpush.bf16.msra.mxu0 %v669
    %912 = vmatpush.bf16.msra.mxu0 %v667
    %913 = vmatpush.bf16.msra.mxu0 %v665
    %914 = vmatpush.bf16.msra.mxu0 %v663
    %915 = vmatmul.bf16.gmra.mxu0 %v203
    %v916 = vpop.f32.mrf.mxu0
    %v917 = vadd.f32 %v904, %v916
    %v918 = vpop.f32.mrf.mxu0
    %919 = vdwg.mxu0
    %920 = vmatpush.bf16.msra.mxu0 %v693
    %921 = vmatpush.bf16.msra.mxu0 %v691
    %922 = vmatpush.bf16.msra.mxu0 %v689
    %923 = vmatpush.bf16.msra.mxu0 %v687
    %924 = vmatpush.bf16.msra.mxu0 %v685
    %925 = vmatpush.bf16.msra.mxu0 %v683
    %926 = vmatpush.bf16.msra.mxu0 %v681
    %927 = vmatpush.bf16.msra.mxu0 %v679
    %928 = vmatmul.bf16.gmra.mxu0 %v204
    %v929 = vpop.f32.mrf.mxu0
    %v930 = vadd.f32 %v917, %v929
    %v931 = vpop.f32.mrf.mxu0
    %932 = vdwg.mxu0
    %933 = vmatpush.bf16.msra.mxu0 %v709
    %934 = vmatpush.bf16.msra.mxu0 %v707
    %935 = vmatpush.bf16.msra.mxu0 %v705
    %936 = vmatpush.bf16.msra.mxu0 %v703
    %937 = vmatpush.bf16.msra.mxu0 %v701
    %938 = vmatpush.bf16.msra.mxu0 %v699
    %939 = vmatpush.bf16.msra.mxu0 %v697
    %940 = vmatpush.bf16.msra.mxu0 %v695
    %941 = vmatmul.bf16.gmra.mxu0 %v205
    %v942 = vpop.f32.mrf.mxu0
    %v943 = vadd.f32 %v930, %v942
    %v944 = vpop.f32.mrf.mxu0
    %945 = vdwg.mxu0
    %946 = vmatpush.bf16.msra.mxu0 %v725
    %947 = vmatpush.bf16.msra.mxu0 %v723
    %948 = vmatpush.bf16.msra.mxu0 %v721
    %949 = vmatpush.bf16.msra.mxu0 %v719
    %950 = vmatpush.bf16.msra.mxu0 %v717
    %951 = vmatpush.bf16.msra.mxu0 %v715
    %952 = vmatpush.bf16.msra.mxu0 %v713
    %953 = vmatpush.bf16.msra.mxu0 %v711
    %954 = vmatmul.bf16.gmra.mxu0 %v206
    %v955 = vpop.f32.mrf.mxu0
    %v956 = vadd.f32 %v943, %v955
    %v957 = vpop.f32.mrf.mxu0
    %958 = vdwg.mxu0
    %959 = vmatpush.bf16.msra.mxu0 %v614
    %960 = vmatpush.bf16.msra.mxu0 %v612
    %961 = vmatpush.bf16.msra.mxu0 %v610
    %962 = vmatpush.bf16.msra.mxu0 %v608
    %963 = vmatpush.bf16.msra.mxu0 %v606
    %964 = vmatpush.bf16.msra.mxu0 %v604
    %965 = vmatpush.bf16.msra.mxu0 %v602
    %966 = vmatpush.bf16.msra.mxu0 %v600
    %967 = vmatmul.bf16.gmra.mxu0 %v199
    %v968 = vpop.f32.mrf.mxu0
    %v969 = vadd.f32 0.0, %v968
    %v970 = vpop.f32.mrf.mxu0
    %971 = vdwg.mxu0
    %972 = vmatpush.bf16.msra.mxu0 %v630
    %973 = vmatpush.bf16.msra.mxu0 %v628
    %974 = vmatpush.bf16.msra.mxu0 %v626
    %975 = vmatpush.bf16.msra.mxu0 %v624
    %976 = vmatpush.bf16.msra.mxu0 %v622
    %977 = vmatpush.bf16.msra.mxu0 %v620
    %978 = vmatpush.bf16.msra.mxu0 %v618
    %979 = vmatpush.bf16.msra.mxu0 %v616
    %980 = vmatmul.bf16.gmra.mxu0 %v200
    %v981 = vpop.f32.mrf.mxu0
    %v982 = vadd.f32 %v969, %v981
    %v983 = vpop.f32.mrf.mxu0
    %984 = vdwg.mxu0
    %985 = vmatpush.bf16.msra.mxu0 %v646
    %986 = vmatpush.bf16.msra.mxu0 %v644
    %987 = vmatpush.bf16.msra.mxu0 %v642
    %988 = vmatpush.bf16.msra.mxu0 %v640
    %989 = vmatpush.bf16.msra.mxu0 %v638
    %990 = vmatpush.bf16.msra.mxu0 %v636
    %991 = vmatpush.bf16.msra.mxu0 %v634
    %992 = vmatpush.bf16.msra.mxu0 %v632
    %993 = vmatmul.bf16.gmra.mxu0 %v201
    %v994 = vpop.f32.mrf.mxu0
    %v995 = vadd.f32 %v982, %v994
    %v996 = vpop.f32.mrf.mxu0
    %997 = vdwg.mxu0
    %998 = vmatpush.bf16.msra.mxu0 %v662
    %999 = vmatpush.bf16.msra.mxu0 %v660
    %1000 = vmatpush.bf16.msra.mxu0 %v658
    %1001 = vmatpush.bf16.msra.mxu0 %v656
    %1002 = vmatpush.bf16.msra.mxu0 %v654
    %1003 = vmatpush.bf16.msra.mxu0 %v652
    %1004 = vmatpush.bf16.msra.mxu0 %v650
    %1005 = vmatpush.bf16.msra.mxu0 %v648
    %1006 = vmatmul.bf16.gmra.mxu0 %v202
    %v1007 = vpop.f32.mrf.mxu0
    %v1008 = vadd.f32 %v995, %v1007
    %v1009 = vpop.f32.mrf.mxu0
    %1010 = vdwg.mxu0
    %1011 = vmatpush.bf16.msra.mxu0 %v678
    %1012 = vmatpush.bf16.msra.mxu0 %v676
    %1013 = vmatpush.bf16.msra.mxu0 %v674
    %1014 = vmatpush.bf16.msra.mxu0 %v672
    %1015 = vmatpush.bf16.msra.mxu0 %v670
    %1016 = vmatpush.bf16.msra.mxu0 %v668
    %1017 = vmatpush.bf16.msra.mxu0 %v666
    %1018 = vmatpush.bf16.msra.mxu0 %v664
    %1019 = vmatmul.bf16.gmra.mxu0 %v203
    %v1020 = vpop.f32.mrf.mxu0
    %v1021 = vadd.f32 %v1008, %v1020
    %v1022 = vpop.f32.mrf.mxu0
    %1023 = vdwg.mxu0
    %1024 = vmatpush.bf16.msra.mxu0 %v694
    %1025 = vmatpush.bf16.msra.mxu0 %v692
    %1026 = vmatpush.bf16.msra.mxu0 %v690
    %1027 = vmatpush.bf16.msra.mxu0 %v688
    %1028 = vmatpush.bf16.msra.mxu0 %v686
    %1029 = vmatpush.bf16.msra.mxu0 %v684
    %1030 = vmatpush.bf16.msra.mxu0 %v682
    %1031 = vmatpush.bf16.msra.mxu0 %v680
    %1032 = vmatmul.bf16.gmra.mxu0 %v204
    %v1033 = vpop.f32.mrf.mxu0
    %v1034 = vadd.f32 %v1021, %v1033
    %v1035 = vpop.f32.mrf.mxu0
    %1036 = vdwg.mxu0
    %1037 = vmatpush.bf16.msra.mxu0 %v710
    %1038 = vmatpush.bf16.msra.mxu0 %v708
    %1039 = vmatpush.bf16.msra.mxu0 %v706
    %1040 = vmatpush.bf16.msra.mxu0 %v704
    %1041 = vmatpush.bf16.msra.mxu0 %v702
    %1042 = vmatpush.bf16.msra.mxu0 %v700
    %1043 = vmatpush.bf16.msra.mxu0 %v698
    %1044 = vmatpush.bf16.msra.mxu0 %v696
    %1045 = vmatmul.bf16.gmra.mxu0 %v205
    %v1046 = vpop.f32.mrf.mxu0
    %v1047 = vadd.f32 %v1034, %v1046
    %v1048 = vpop.f32.mrf.mxu0
    %1049 = vdwg.mxu0
    %1050 = vmatpush.bf16.msra.mxu0 %v726
    %1051 = vmatpush.bf16.msra.mxu0 %v724
    %1052 = vmatpush.bf16.msra.mxu0 %v722
    %1053 = vmatpush.bf16.msra.mxu0 %v720
    %1054 = vmatpush.bf16.msra.mxu0 %v718
    %1055 = vmatpush.bf16.msra.mxu0 %v716
    %1056 = vmatpush.bf16.msra.mxu0 %v714
    %1057 = vmatpush.bf16.msra.mxu0 %v712
    %1058 = vmatmul.bf16.gmra.mxu0 %v206
    %v1059 = vpop.f32.mrf.mxu0
    %v1060 = vadd.f32 %v1047, %v1059
    %v1061 = vpop.f32.mrf.mxu0
    %1062 = vdwg.mxu0
    %v1065 = vrot.slane %v1060, 4
    %vm1066 = vcmask 1043456
    %v1067 = vsel %vm1066, %v956, %v1065
    %v1069 = vadd.f32 %v63, %v1067
    %1070 = vst [vmem:[#allocation2] sm:$0xff] %v1069
    // Predicated region
    $region30: #{tpu_custom_call.1} parent=1 // pred_check
      %p1071 = pneg %p58
    $region31: #{tpu_custom_call.1} parent=1 // pred_check_branch
      %1073 = sbr.rel (%p1071) target = $region33
    $region32: #{tpu_custom_call.1} parent=1 // pred_region
      %v1074 = vld [vmem:[#allocation2] sm:$0xff]
      %v1075 = vld [vmem:[#allocation8] sm:$0x3]
      %v1077 = vperm.slane %v1075, 0
      %v1078 = vperm.slane %v1075, 1
      %v1079 = vrot.slane %v1078, 4
      %v1080 = vsel %vm1066, %v1077, %v1079
      %v1082 = vadd.f32 %v1074, %v1080
      %v1083 = vmax.f32 %v1082, 0.0
      %1085 = vst [vmem:[#allocation1] ss:$2 sm:$0xff] %v1083
      %v1086 = vld.sshfl [vmem:[#allocation1] sm:$0xff pattern:$0x75316420]
      %v1087 = vld.sshfl [vmem:[#allocation1 + $0x8] sm:$0xff pattern:$0x75316420]
      %v1090 = vpack.c.bf16 %v1087, %v1086
      %v1092 = vrot.slane %v1090, 2
      %vm1093 = vcmask 1041408
      %v1096 = vsel %vm1093, %v1090, %v1092
      %1098 = vst [vmem:[#allocation9] sm:$0xf] %v1096
    $region33: #{tpu_custom_call.1} parent=1 // pred_fallthru
      _
    // Predicated region
    $region34: #{tpu_custom_call.1} parent=1 // pred_check
      _
    $region35: #{tpu_custom_call.1} parent=1 // pred_check_branch
      %1100 = sbr.rel (0) target = $region37
    $region36: #{tpu_custom_call.1} parent=1 // pred_region
      %1102 = vsyncadd [#allocation5], 0
      %s1104 = sshll.u32 [#allocation9], 4
      %s1105 = int_to_ptr.vmem [resolvable:$true] %s1104
      %s1106 = sshll.u32 %s3, 4
      %s1107 = int_to_ptr.hbm [resolvable:$true] %s1106
      %1109 = dma.vmem_to_hbm [thread:$0]  %s1105, 64, %s1107, [#allocation5]
    $region37: #{tpu_custom_call.1} parent=1 // pred_fallthru
      _
    // Predicated region
    $region38: #{tpu_custom_call.1} parent=1 // pred_check
      _
    $region39: #{tpu_custom_call.1} parent=1 // pred_check_branch
      %1111 = sbr.rel (0) target = $region41
    $region40: #{tpu_custom_call.1} parent=1 // pred_region
      %1113 = dma.done [#allocation5], 64
    $region41: #{tpu_custom_call.1} parent=1 // pred_fallthru
      _
    %1114 = vsyncpa [#allocation4], 1
    %1115 = vsyncpa [#allocation7], 1
    %1116 = vsyncpa [#allocation5], 1

</llo_original>
